<compile_context>
chip_gen: v5e
topology: v5e:2x2
jax: 0.10.0
libtpu: 0.0.40
codegen_flags: <defaults>
</compile_context>

<pallas_src>
import jax
import jax.numpy as jnp
from jax.experimental import pallas as pl
from jax.experimental.pallas import tpu as pltpu


def _round_up(x, m):
    return (x + m - 1) // m * m


# Conservative: double-buffered working set stays under v5e's 16 MiB scoped
# VMEM default (also fine for v6e 32 MiB scoped / v7x 64 MiB physical).
_VMEM_BUDGET_BYTES = 12 * 1024 * 1024


def _clamp_block_m(tm, K, N, x_bytes, out_bytes, w_bytes):
    # Weight + bias conservatively counted double-buffered.
    fixed = 2 * (K * N * w_bytes + 8 * N * 4)
    per_row = 2 * K * x_bytes + 2 * N * out_bytes  # x tile + out tile, 2-deep
    max_rows = max(8, (_VMEM_BUDGET_BYTES - fixed) // per_row)
    tm = min(tm, int(max_rows))
    return max(8, (tm // 8) * 8)


def _linear_kernel(x_ref, w_ref, b_ref, o_ref):
    # In-kernel cast of the streamed x tile to the (resident) weight dtype:
    # a VPU op hidden under the DMA, so f32 inputs never take an extra HBM
    # pass.  Single MXU dot with f32 accumulation; bias add fused into the
    # only store.
    x = x_ref[...].astype(w_ref.dtype)
    acc = jnp.dot(x, w_ref[...], preferred_element_type=jnp.float32)
    o_ref[...] = (acc + b_ref[...]).astype(o_ref.dtype)


def prepare_bert_reducer_params(w, b, *, compute_dtype=jnp.bfloat16):
    """One-time parameter prep (hoisted out of the per-call path).

    w: [N, K] (PyTorch nn.Linear layout)   b: [N]
    Returns (w_t [K, N] in compute dtype, b_row [1, N] float32).
    """
    cdt = compute_dtype if compute_dtype is not None else w.dtype
    w_t = jnp.swapaxes(w, 0, 1).astype(cdt)          # [K, N], VMEM-resident
    b_row = b.astype(jnp.float32).reshape(1, -1)      # [1, N]
    return w_t, b_row


def bert_reducer_forward(x, w_t, b_row, *, block_m=1024):
    """y = x @ w.T + b  (PyTorch nn.Linear semantics), via prepared params.

    x: [..., K] in its native dtype (no wrapper-side cast).
    w_t: [K, N] (already transposed / cast), b_row: [1, N] float32.
    """
    orig_shape = x.shape
    K = orig_shape[-1]
    Kw, N = w_t.shape
    assert Kw == K, (Kw, K)
    out_dtype = x.dtype

    x2d = x.reshape(-1, K)
    M = x2d.shape[0]

    x_bytes = jnp.dtype(x.dtype).itemsize
    out_bytes = jnp.dtype(out_dtype).itemsize
    w_bytes = jnp.dtype(w_t.dtype).itemsize

    # Pick the M tile: large, multiple of 8, within the VMEM budget.
    tm = min(_round_up(block_m, 8), _round_up(M, 8))
    tm = _clamp_block_m(tm, K, N, x_bytes, out_bytes, w_bytes)

    grid_m = pl.cdiv(M, tm)
    if M >= 2048:
        # v7x: 2 TensorCores share the parallel axis — aim for an even number
        # of >= 4 grid steps so each core gets >= 2 pipelined, balanced steps.
        target = max(4, grid_m + (grid_m % 2))
        if target != grid_m:
            tm = max(8, _round_up(pl.cdiv(M, target), 8))
            grid_m = pl.cdiv(M, tm)

    cost = pl.CostEstimate(
        flops=2 * M * K * N,
        transcendentals=0,
        bytes_accessed=M * K * x_bytes + K * N * w_bytes + M * N * out_bytes + 4 * N,
    )

    out = pl.pallas_call(
        _linear_kernel,
        out_shape=jax.ShapeDtypeStruct((M, N), out_dtype),
        grid_spec=pltpu.PrefetchScalarGridSpec(
            num_scalar_prefetch=0,
            grid=(grid_m,),
            in_specs=[
                pl.BlockSpec((tm, K), lambda i: (i, 0)),   # x tile (streamed)
                pl.BlockSpec((K, N), lambda i: (0, 0)),    # weight (VMEM-resident)
                pl.BlockSpec((1, N), lambda i: (0, 0)),    # bias   (VMEM-resident)
            ],
            out_specs=pl.BlockSpec((tm, N), lambda i: (i, 0)),
        ),
        compiler_params=pltpu.CompilerParams(
            dimension_semantics=("parallel",),
        ),
        cost_estimate=cost,
    )(x2d, w_t, b_row)

    return out.reshape(*orig_shape[:-1], N)


if __name__ == "__main__":
    input_size, output_size = 768, 64
    batch, seq = 2, 8  # small leading dims; Linear acts on the last dim

    key = jax.random.PRNGKey(0)
    kx, kw, kb = jax.random.split(key, 3)

    # Deterministic init matching PyTorch Linear's U(-1/sqrt(K), 1/sqrt(K)).
    bound = 1.0 / (input_size ** 0.5)
    w = jax.random.uniform(kw, (output_size, input_size), jnp.float32, -bound, bound)
    b = jax.random.uniform(kb, (output_size,), jnp.float32, -bound, bound)
    x = jax.random.normal(kx, (batch, seq, input_size), jnp.float32)

    # Default path: bf16 weight resident in VMEM, f32 x streamed and cast
    # in-kernel, f32 accumulate, f32 output.  Params prepped once.
    w_bf16, b_row = prepare_bert_reducer_params(w, b, compute_dtype=jnp.bfloat16)
    y = bert_reducer_forward(x, w_bf16, b_row)
    jax.block_until_ready(y)

    y_ref = x @ w.T + b
    assert y.shape == (batch, seq, output_size)
    # bf16 rounding inside the kernel => relaxed tolerance vs pure-f32 ref.
    assert jnp.allclose(y, y_ref, atol=2e-2, rtol=2e-2), float(
        jnp.max(jnp.abs(y - y_ref))
    )

    # Pure-f32 path on a ragged token count (M not a multiple of the tile /
    # not a multiple of 8) exercising the masked tail block.
    w_f32, b_row32 = prepare_bert_reducer_params(w, b, compute_dtype=None)
    x2 = jax.random.normal(kx, (3, 7, input_size), jnp.float32)
    y2 = bert_reducer_forward(x2, w_f32, b_row32)
    jax.block_until_ready(y2)
    y2_ref = x2 @ w.T + b
    assert y2.shape == (3, 7, output_size)
    assert jnp.allclose(y2, y2_ref, atol=1e-4, rtol=1e-4), float(
        jnp.max(jnp.abs(y2 - y2_ref))
    )

    print("KERNEL_OK")
</pallas_src>

<mosaic_0001>
module attributes {stable_mosaic.version = 11 : i64} {
  func.func @_linear_kernel(%arg0: i32, %arg1: memref<16x768xf32, #tpu.memory_space<vmem>>, %arg2: memref<768x64xbf16, #tpu.memory_space<vmem>>, %arg3: memref<1x64xf32, #tpu.memory_space<vmem>>, %arg4: memref<16x64xf32, #tpu.memory_space<vmem>>) attributes {dimension_semantics = [#tpu.dimension_semantics<parallel>], iteration_bounds = array<i64: 1>, scalar_prefetch = 0 : i64, scratch_operands = 0 : i64, tpu.core_type = #tpu.core_type<tc>, window_params = [{transform_indices = @transform_0, window_bounds = array<i64: 16, 768>}, {pipeline_mode = #tpu.pipeline_mode<synchronous>, transform_indices = @transform_1, window_bounds = array<i64: 768, 64>}, {pipeline_mode = #tpu.pipeline_mode<synchronous>, transform_indices = @transform_2, window_bounds = array<i64: 1, 64>}, {transform_indices = @transform_3, window_bounds = array<i64: 16, 64>}]} {
    %c0 = arith.constant 0 : index
    %c0_0 = arith.constant 0 : index
    %0 = vector.load %arg1[%c0, %c0_0] : memref<16x768xf32, #tpu.memory_space<vmem>>, vector<16x768xf32>
    %1 = arith.truncf %0 : vector<16x768xf32> to vector<16x768xbf16>
    %c0_1 = arith.constant 0 : index
    %c0_2 = arith.constant 0 : index
    %2 = vector.load %arg2[%c0_1, %c0_2] : memref<768x64xbf16, #tpu.memory_space<vmem>>, vector<768x64xbf16>
    %cst = arith.constant dense<0.000000e+00> : vector<16x64xf32>
    %3 = tpu.matmul %1, %2, %cst {dimension_numbers = #tpu.dot_dimension_numbers<[1], [0], [0], [1], [0, 0, 1, 1], [], []>} : vector<16x768xbf16>, vector<768x64xbf16>, vector<16x64xf32> -> vector<16x64xf32>
    %c0_3 = arith.constant 0 : index
    %c0_4 = arith.constant 0 : index
    %4 = vector.load %arg3[%c0_3, %c0_4] : memref<1x64xf32, #tpu.memory_space<vmem>>, vector<1x64xf32>
    %5 = vector.broadcast %4 : vector<1x64xf32> to vector<16x64xf32>
    %6 = arith.addf %3, %5 : vector<16x64xf32>
    %c0_5 = arith.constant 0 : index
    %c0_6 = arith.constant 0 : index
    %7 = vector.load %arg4[%c0_5, %c0_6] : memref<16x64xf32, #tpu.memory_space<vmem>>, vector<16x64xf32>
    tpu.vector_store %arg4[%c0_5, %c0_6], %6 {strides = array<i32>} : memref<16x64xf32, #tpu.memory_space<vmem>>, vector<16x64xf32>,
    return
  }
  func.func @transform_0(%arg0: i32) -> (i32, i32) {
    %c0_i32 = arith.constant 0 : i32
    %c0_i32_0 = arith.constant 0 : i32
    return %arg0, %c0_i32 : i32, i32
  }
  func.func @transform_1(%arg0: i32) -> (i32, i32) {
    %c0_i32 = arith.constant 0 : i32
    %c0_i32_0 = arith.constant 0 : i32
    %c0_i32_1 = arith.constant 0 : i32
    return %c0_i32, %c0_i32_0 : i32, i32
  }
  func.func @transform_2(%arg0: i32) -> (i32, i32) {
    %c0_i32 = arith.constant 0 : i32
    %c0_i32_0 = arith.constant 0 : i32
    %c0_i32_1 = arith.constant 0 : i32
    return %c0_i32, %c0_i32_0 : i32, i32
  }
  func.func @transform_3(%arg0: i32) -> (i32, i32) {
    %c0_i32 = arith.constant 0 : i32
    %c0_i32_0 = arith.constant 0 : i32
    return %arg0, %c0_i32 : i32, i32
  }
}

</mosaic_0001>

<llo_original>
// kernel: tpu_custom_call.1
$region0: #{tpu_custom_call.1}
  #allocation0 [shape = 'u32[]', space=smem, size = 0x4, offset = 0x4, fixed_abs, tag = 'smem constant byte address 0x4 - core index']
  #allocation1 [shape = 'u32[72,128]{1,0:T(1,128)}', space=vmem, size = 0x9000, scoped, tag = 'internal scratch']
  %s0 = inlined_call_operand.vmem [shape: f32[16,768], index: 0, kind: input, shape index: {}]
  %s1 = inlined_call_operand.vmem [shape: bf16[768,64], index: 1, kind: input, shape index: {}]
  %s2 = inlined_call_operand.vmem [shape: f32[1,64], index: 2, kind: input, shape index: {}]
  %s3 = inlined_call_operand.hbm [shape: f32[16,64], index: 3, kind: output, shape index: {}]
  %s4 = sld [smem:[#allocation0]]
  $region22: #{tpu_custom_call.1} parent=0
    _
  %s6 = ssub.s32 1, %s4
  %s7 = scalar_select 0, %s6, %s4
  $region1: #{tpu_custom_call.1} parent=0
    #allocation2 [shape = 'u8[8192]{0}', space=vmem, size = 0x2000, scoped, tag = 'output window, operand 0, single buffered']
    #allocation3 [shape = 's32[1]{0}', space=sflag, size = 0x4, scoped, tag = 'scoped memory for tpu_custom_call.1']
    %8 = vsyncpa [#allocation3], 0
    // Predicated region
    $region2: #{tpu_custom_call.1} parent=1 // pred_check
      _
    $region3: #{tpu_custom_call.1} parent=1 // pred_check_branch
      %10 = sbr.rel (0) target = $region5
    $region4: #{tpu_custom_call.1} parent=1 // pred_region
      _
    $region5: #{tpu_custom_call.1} parent=1 // pred_fallthru
      _
    // Predicated region
    $region6: #{tpu_custom_call.1} parent=1 // pred_check
      _
    $region7: #{tpu_custom_call.1} parent=1 // pred_check_branch
      %12 = sbr.rel (0) target = $region9
    $region8: #{tpu_custom_call.1} parent=1 // pred_region
      _
    $region9: #{tpu_custom_call.1} parent=1 // pred_fallthru
      _
    // Predicated region
    $region10: #{tpu_custom_call.1} parent=1 // pred_check
      _
    $region11: #{tpu_custom_call.1} parent=1 // pred_check_branch
      %14 = sbr.rel (0) target = $region13
    $region12: #{tpu_custom_call.1} parent=1 // pred_region
      _
    $region13: #{tpu_custom_call.1} parent=1 // pred_fallthru
      _
    %v15 = vld [vmem:[%s0] sm:$0xff]
    %v16 = vld [vmem:[%s0 + $0x8] sm:$0xff]
    %v17 = vld [vmem:[%s0 + $0x10] sm:$0xff]
    %v18 = vld [vmem:[%s0 + $0x18] sm:$0xff]
    %v19 = vld [vmem:[%s0 + $0x20] sm:$0xff]
    %v20 = vld [vmem:[%s0 + $0x28] sm:$0xff]
    %v21 = vld [vmem:[%s0 + $0x30] sm:$0xff]
    %v22 = vld [vmem:[%s0 + $0x38] sm:$0xff]
    %v23 = vld [vmem:[%s0 + $0x40] sm:$0xff]
    %v24 = vld [vmem:[%s0 + $0x48] sm:$0xff]
    %v25 = vld [vmem:[%s0 + $0x50] sm:$0xff]
    %v26 = vld [vmem:[%s0 + $0x58] sm:$0xff]
    %v27 = vpack.c.bf16 %v21, %v15
    %v28 = vpack.c.bf16 %v22, %v16
    %v29 = vpack.c.bf16 %v23, %v17
    %v30 = vpack.c.bf16 %v24, %v18
    %v31 = vpack.c.bf16 %v25, %v19
    %v32 = vpack.c.bf16 %v26, %v20
    %v33 = vld [vmem:[%s1] sm:$0xf]
    %v34 = vld [vmem:[%s1 + $0x4] sm:$0xf]
    %v35 = vld [vmem:[%s1 + $0x8] sm:$0xf]
    %v36 = vld [vmem:[%s1 + $0xc] sm:$0xf]
    %v37 = vld [vmem:[%s1 + $0x10] sm:$0xf]
    %v38 = vld [vmem:[%s1 + $0x14] sm:$0xf]
    %v39 = vld [vmem:[%s1 + $0x18] sm:$0xf]
    %v40 = vld [vmem:[%s1 + $0x1c] sm:$0xf]
    %v41 = vld [vmem:[%s1 + $0x20] sm:$0xf]
    %v42 = vld [vmem:[%s1 + $0x24] sm:$0xf]
    %v43 = vld [vmem:[%s1 + $0x28] sm:$0xf]
    %v44 = vld [vmem:[%s1 + $0x2c] sm:$0xf]
    %v45 = vld [vmem:[%s1 + $0x30] sm:$0xf]
    %v46 = vld [vmem:[%s1 + $0x34] sm:$0xf]
    %v47 = vld [vmem:[%s1 + $0x38] sm:$0xf]
    %v48 = vld [vmem:[%s1 + $0x3c] sm:$0xf]
    %v49 = vld [vmem:[%s1 + $0x40] sm:$0xf]
    %v50 = vld [vmem:[%s1 + $0x44] sm:$0xf]
    %v51 = vld [vmem:[%s1 + $0x48] sm:$0xf]
    %v52 = vld [vmem:[%s1 + $0x4c] sm:$0xf]
    %v53 = vld [vmem:[%s1 + $0x50] sm:$0xf]
    %v54 = vld [vmem:[%s1 + $0x54] sm:$0xf]
    %v55 = vld [vmem:[%s1 + $0x58] sm:$0xf]
    %v56 = vld [vmem:[%s1 + $0x5c] sm:$0xf]
    %v57 = vld [vmem:[%s1 + $0x60] sm:$0xf]
    %v58 = vld [vmem:[%s1 + $0x64] sm:$0xf]
    %v59 = vld [vmem:[%s1 + $0x68] sm:$0xf]
    %v60 = vld [vmem:[%s1 + $0x6c] sm:$0xf]
    %v61 = vld [vmem:[%s1 + $0x70] sm:$0xf]
    %v62 = vld [vmem:[%s1 + $0x74] sm:$0xf]
    %v63 = vld [vmem:[%s1 + $0x78] sm:$0xf]
    %v64 = vld [vmem:[%s1 + $0x7c] sm:$0xf]
    %v65 = vld [vmem:[%s1 + $0x80] sm:$0xf]
    %v66 = vld [vmem:[%s1 + $0x84] sm:$0xf]
    %v67 = vld [vmem:[%s1 + $0x88] sm:$0xf]
    %v68 = vld [vmem:[%s1 + $0x8c] sm:$0xf]
    %v69 = vld [vmem:[%s1 + $0x90] sm:$0xf]
    %v70 = vld [vmem:[%s1 + $0x94] sm:$0xf]
    %v71 = vld [vmem:[%s1 + $0x98] sm:$0xf]
    %v72 = vld [vmem:[%s1 + $0x9c] sm:$0xf]
    %v73 = vld [vmem:[%s1 + $0xa0] sm:$0xf]
    %v74 = vld [vmem:[%s1 + $0xa4] sm:$0xf]
    %v75 = vld [vmem:[%s1 + $0xa8] sm:$0xf]
    %v76 = vld [vmem:[%s1 + $0xac] sm:$0xf]
    %v77 = vld [vmem:[%s1 + $0xb0] sm:$0xf]
    %v78 = vld [vmem:[%s1 + $0xb4] sm:$0xf]
    %v79 = vld [vmem:[%s1 + $0xb8] sm:$0xf]
    %v80 = vld [vmem:[%s1 + $0xbc] sm:$0xf]
    %v81 = vld [vmem:[%s1 + $0xc0] sm:$0xf]
    %v82 = vld [vmem:[%s1 + $0xc4] sm:$0xf]
    %v83 = vld [vmem:[%s1 + $0xc8] sm:$0xf]
    %v84 = vld [vmem:[%s1 + $0xcc] sm:$0xf]
    %v85 = vld [vmem:[%s1 + $0xd0] sm:$0xf]
    %v86 = vld [vmem:[%s1 + $0xd4] sm:$0xf]
    %v87 = vld [vmem:[%s1 + $0xd8] sm:$0xf]
    %v88 = vld [vmem:[%s1 + $0xdc] sm:$0xf]
    %v89 = vld [vmem:[%s1 + $0xe0] sm:$0xf]
    %v90 = vld [vmem:[%s1 + $0xe4] sm:$0xf]
    %v91 = vld [vmem:[%s1 + $0xe8] sm:$0xf]
    %v92 = vld [vmem:[%s1 + $0xec] sm:$0xf]
    %v93 = vld [vmem:[%s1 + $0xf0] sm:$0xf]
    %v94 = vld [vmem:[%s1 + $0xf4] sm:$0xf]
    %v95 = vld [vmem:[%s1 + $0xf8] sm:$0xf]
    %v96 = vld [vmem:[%s1 + $0xfc] sm:$0xf]
    %v97 = vld [vmem:[%s1 + $0x100] sm:$0xf]
    %v98 = vld [vmem:[%s1 + $0x104] sm:$0xf]
    %v99 = vld [vmem:[%s1 + $0x108] sm:$0xf]
    %v100 = vld [vmem:[%s1 + $0x10c] sm:$0xf]
    %v101 = vld [vmem:[%s1 + $0x110] sm:$0xf]
    %v102 = vld [vmem:[%s1 + $0x114] sm:$0xf]
    %v103 = vld [vmem:[%s1 + $0x118] sm:$0xf]
    %v104 = vld [vmem:[%s1 + $0x11c] sm:$0xf]
    %v105 = vld [vmem:[%s1 + $0x120] sm:$0xf]
    %v106 = vld [vmem:[%s1 + $0x124] sm:$0xf]
    %v107 = vld [vmem:[%s1 + $0x128] sm:$0xf]
    %v108 = vld [vmem:[%s1 + $0x12c] sm:$0xf]
    %v109 = vld [vmem:[%s1 + $0x130] sm:$0xf]
    %v110 = vld [vmem:[%s1 + $0x134] sm:$0xf]
    %v111 = vld [vmem:[%s1 + $0x138] sm:$0xf]
    %v112 = vld [vmem:[%s1 + $0x13c] sm:$0xf]
    %v113 = vld [vmem:[%s1 + $0x140] sm:$0xf]
    %v114 = vld [vmem:[%s1 + $0x144] sm:$0xf]
    %v115 = vld [vmem:[%s1 + $0x148] sm:$0xf]
    %v116 = vld [vmem:[%s1 + $0x14c] sm:$0xf]
    %v117 = vld [vmem:[%s1 + $0x150] sm:$0xf]
    %v118 = vld [vmem:[%s1 + $0x154] sm:$0xf]
    %v119 = vld [vmem:[%s1 + $0x158] sm:$0xf]
    %v120 = vld [vmem:[%s1 + $0x15c] sm:$0xf]
    %v121 = vld [vmem:[%s1 + $0x160] sm:$0xf]
    %v122 = vld [vmem:[%s1 + $0x164] sm:$0xf]
    %v123 = vld [vmem:[%s1 + $0x168] sm:$0xf]
    %v124 = vld [vmem:[%s1 + $0x16c] sm:$0xf]
    %v125 = vld [vmem:[%s1 + $0x170] sm:$0xf]
    %v126 = vld [vmem:[%s1 + $0x174] sm:$0xf]
    %v127 = vld [vmem:[%s1 + $0x178] sm:$0xf]
    %v128 = vld [vmem:[%s1 + $0x17c] sm:$0xf]
    %v129 = vld [vmem:[%s2] sm:$0x1]
    %v131 = vperm.slane %v129, 0
    %v229 = vunpack.c.l.b16 %v33
    %v230 = vunpack.c.l.b16 %v34
    %v231 = vunpack.c.l.b16 %v35
    %v232 = vunpack.c.l.b16 %v36
    %v233 = vunpack.c.l.b16 %v37
    %v234 = vunpack.c.l.b16 %v38
    %v235 = vunpack.c.l.b16 %v39
    %v236 = vunpack.c.l.b16 %v40
    %v237 = vunpack.c.l.b16 %v41
    %v238 = vunpack.c.l.b16 %v42
    %v239 = vunpack.c.l.b16 %v43
    %v240 = vunpack.c.l.b16 %v44
    %v241 = vunpack.c.l.b16 %v45
    %v242 = vunpack.c.l.b16 %v46
    %v243 = vunpack.c.l.b16 %v47
    %v244 = vunpack.c.l.b16 %v48
    %v245 = vunpack.c.l.b16 %v49
    %v246 = vunpack.c.l.b16 %v50
    %v247 = vunpack.c.l.b16 %v51
    %v248 = vunpack.c.l.b16 %v52
    %v249 = vunpack.c.l.b16 %v53
    %v250 = vunpack.c.l.b16 %v54
    %v251 = vunpack.c.l.b16 %v55
    %v252 = vunpack.c.l.b16 %v56
    %v253 = vunpack.c.l.b16 %v57
    %v254 = vunpack.c.l.b16 %v58
    %v255 = vunpack.c.l.b16 %v59
    %v256 = vunpack.c.l.b16 %v60
    %v257 = vunpack.c.l.b16 %v61
    %v258 = vunpack.c.l.b16 %v62
    %v259 = vunpack.c.l.b16 %v63
    %v260 = vunpack.c.l.b16 %v64
    %v261 = vunpack.c.l.b16 %v65
    %v262 = vunpack.c.l.b16 %v66
    %v263 = vunpack.c.l.b16 %v67
    %v264 = vunpack.c.l.b16 %v68
    %v265 = vunpack.c.l.b16 %v69
    %v266 = vunpack.c.l.b16 %v70
    %v267 = vunpack.c.l.b16 %v71
    %v268 = vunpack.c.l.b16 %v72
    %v269 = vunpack.c.l.b16 %v73
    %v270 = vunpack.c.l.b16 %v74
    %v271 = vunpack.c.l.b16 %v75
    %v272 = vunpack.c.l.b16 %v76
    %v273 = vunpack.c.l.b16 %v77
    %v274 = vunpack.c.l.b16 %v78
    %v275 = vunpack.c.l.b16 %v79
    %v276 = vunpack.c.l.b16 %v80
    %v277 = vunpack.c.l.b16 %v81
    %v278 = vunpack.c.l.b16 %v82
    %v279 = vunpack.c.l.b16 %v83
    %v280 = vunpack.c.l.b16 %v84
    %v281 = vunpack.c.l.b16 %v85
    %v282 = vunpack.c.l.b16 %v86
    %v283 = vunpack.c.l.b16 %v87
    %v284 = vunpack.c.l.b16 %v88
    %v285 = vunpack.c.l.b16 %v89
    %v286 = vunpack.c.l.b16 %v90
    %v287 = vunpack.c.l.b16 %v91
    %v288 = vunpack.c.l.b16 %v92
    %v289 = vunpack.c.l.b16 %v93
    %v290 = vunpack.c.l.b16 %v94
    %v291 = vunpack.c.l.b16 %v95
    %v292 = vunpack.c.l.b16 %v96
    %v293 = vunpack.c.l.b16 %v97
    %v294 = vunpack.c.l.b16 %v98
    %v295 = vunpack.c.l.b16 %v99
    %v296 = vunpack.c.l.b16 %v100
    %v297 = vunpack.c.l.b16 %v101
    %v298 = vunpack.c.l.b16 %v102
    %v299 = vunpack.c.l.b16 %v103
    %v300 = vunpack.c.l.b16 %v104
    %v301 = vunpack.c.l.b16 %v105
    %v302 = vunpack.c.l.b16 %v106
    %v303 = vunpack.c.l.b16 %v107
    %v304 = vunpack.c.l.b16 %v108
    %v305 = vunpack.c.l.b16 %v109
    %v306 = vunpack.c.l.b16 %v110
    %v307 = vunpack.c.l.b16 %v111
    %v308 = vunpack.c.l.b16 %v112
    %v309 = vunpack.c.l.b16 %v113
    %v310 = vunpack.c.l.b16 %v114
    %v311 = vunpack.c.l.b16 %v115
    %v312 = vunpack.c.l.b16 %v116
    %v313 = vunpack.c.l.b16 %v117
    %v314 = vunpack.c.l.b16 %v118
    %v315 = vunpack.c.l.b16 %v119
    %v316 = vunpack.c.l.b16 %v120
    %v317 = vunpack.c.l.b16 %v121
    %v318 = vunpack.c.l.b16 %v122
    %v319 = vunpack.c.l.b16 %v123
    %v320 = vunpack.c.l.b16 %v124
    %v321 = vunpack.c.l.b16 %v125
    %v322 = vunpack.c.l.b16 %v126
    %v323 = vunpack.c.l.b16 %v127
    %v324 = vunpack.c.l.b16 %v128
    %v325 = vpack.c.b16 %v230, %v229
    %v326 = vpack.c.b16 %v232, %v231
    %v327 = vpack.c.b16 %v234, %v233
    %v328 = vpack.c.b16 %v236, %v235
    %v329 = vpack.c.b16 %v238, %v237
    %v330 = vpack.c.b16 %v240, %v239
    %v331 = vpack.c.b16 %v242, %v241
    %v332 = vpack.c.b16 %v244, %v243
    %v333 = vpack.c.b16 %v246, %v245
    %v334 = vpack.c.b16 %v248, %v247
    %v335 = vpack.c.b16 %v250, %v249
    %v336 = vpack.c.b16 %v252, %v251
    %v337 = vpack.c.b16 %v254, %v253
    %v338 = vpack.c.b16 %v256, %v255
    %v339 = vpack.c.b16 %v258, %v257
    %v340 = vpack.c.b16 %v260, %v259
    %v341 = vpack.c.b16 %v262, %v261
    %v342 = vpack.c.b16 %v264, %v263
    %v343 = vpack.c.b16 %v266, %v265
    %v344 = vpack.c.b16 %v268, %v267
    %v345 = vpack.c.b16 %v270, %v269
    %v346 = vpack.c.b16 %v272, %v271
    %v347 = vpack.c.b16 %v274, %v273
    %v348 = vpack.c.b16 %v276, %v275
    %v349 = vpack.c.b16 %v278, %v277
    %v350 = vpack.c.b16 %v280, %v279
    %v351 = vpack.c.b16 %v282, %v281
    %v352 = vpack.c.b16 %v284, %v283
    %v353 = vpack.c.b16 %v286, %v285
    %v354 = vpack.c.b16 %v288, %v287
    %v355 = vpack.c.b16 %v290, %v289
    %v356 = vpack.c.b16 %v292, %v291
    %v357 = vpack.c.b16 %v294, %v293
    %v358 = vpack.c.b16 %v296, %v295
    %v359 = vpack.c.b16 %v298, %v297
    %v360 = vpack.c.b16 %v300, %v299
    %v361 = vpack.c.b16 %v302, %v301
    %v362 = vpack.c.b16 %v304, %v303
    %v363 = vpack.c.b16 %v306, %v305
    %v364 = vpack.c.b16 %v308, %v307
    %v365 = vpack.c.b16 %v310, %v309
    %v366 = vpack.c.b16 %v312, %v311
    %v367 = vpack.c.b16 %v314, %v313
    %v368 = vpack.c.b16 %v316, %v315
    %v369 = vpack.c.b16 %v318, %v317
    %v370 = vpack.c.b16 %v320, %v319
    %v371 = vpack.c.b16 %v322, %v321
    %v372 = vpack.c.b16 %v324, %v323
    %421 = vmatpush.bf16.msra.mxu0 %v332
    %422 = vmatpush.bf16.msra.mxu0 %v331
    %423 = vmatpush.bf16.msra.mxu0 %v330
    %424 = vmatpush.bf16.msra.mxu0 %v329
    %425 = vmatpush.bf16.msra.mxu0 %v328
    %426 = vmatpush.bf16.msra.mxu0 %v327
    %427 = vmatpush.bf16.msra.mxu0 %v326
    %428 = vmatpush.bf16.msra.mxu0 %v325
    %429 = vmatmul.bf16.gmra.mxu0 %v27
    %v430 = vpop.f32.mrf.mxu0
    %v431 = vadd.f32 %v131, %v430
    %v432 = vpop.f32.mrf.mxu0
    %v433 = vadd.f32 %v131, %v432
    %434 = vdwg.mxu0
    %435 = vmatpush.bf16.msra.mxu0 %v340
    %436 = vmatpush.bf16.msra.mxu0 %v339
    %437 = vmatpush.bf16.msra.mxu0 %v338
    %438 = vmatpush.bf16.msra.mxu0 %v337
    %439 = vmatpush.bf16.msra.mxu0 %v336
    %440 = vmatpush.bf16.msra.mxu0 %v335
    %441 = vmatpush.bf16.msra.mxu0 %v334
    %442 = vmatpush.bf16.msra.mxu0 %v333
    %443 = vmatmul.bf16.gmra.mxu0 %v28
    %v444 = vpop.f32.mrf.mxu0
    %v445 = vadd.f32 %v431, %v444
    %v446 = vpop.f32.mrf.mxu0
    %v447 = vadd.f32 %v433, %v446
    %448 = vdwg.mxu0
    %449 = vmatpush.bf16.msra.mxu0 %v348
    %450 = vmatpush.bf16.msra.mxu0 %v347
    %451 = vmatpush.bf16.msra.mxu0 %v346
    %452 = vmatpush.bf16.msra.mxu0 %v345
    %453 = vmatpush.bf16.msra.mxu0 %v344
    %454 = vmatpush.bf16.msra.mxu0 %v343
    %455 = vmatpush.bf16.msra.mxu0 %v342
    %456 = vmatpush.bf16.msra.mxu0 %v341
    %457 = vmatmul.bf16.gmra.mxu0 %v29
    %v458 = vpop.f32.mrf.mxu0
    %v459 = vadd.f32 %v445, %v458
    %v460 = vpop.f32.mrf.mxu0
    %v461 = vadd.f32 %v447, %v460
    %462 = vdwg.mxu0
    %463 = vmatpush.bf16.msra.mxu0 %v356
    %464 = vmatpush.bf16.msra.mxu0 %v355
    %465 = vmatpush.bf16.msra.mxu0 %v354
    %466 = vmatpush.bf16.msra.mxu0 %v353
    %467 = vmatpush.bf16.msra.mxu0 %v352
    %468 = vmatpush.bf16.msra.mxu0 %v351
    %469 = vmatpush.bf16.msra.mxu0 %v350
    %470 = vmatpush.bf16.msra.mxu0 %v349
    %471 = vmatmul.bf16.gmra.mxu0 %v30
    %v472 = vpop.f32.mrf.mxu0
    %v473 = vadd.f32 %v459, %v472
    %v474 = vpop.f32.mrf.mxu0
    %v475 = vadd.f32 %v461, %v474
    %476 = vdwg.mxu0
    %477 = vmatpush.bf16.msra.mxu0 %v364
    %478 = vmatpush.bf16.msra.mxu0 %v363
    %479 = vmatpush.bf16.msra.mxu0 %v362
    %480 = vmatpush.bf16.msra.mxu0 %v361
    %481 = vmatpush.bf16.msra.mxu0 %v360
    %482 = vmatpush.bf16.msra.mxu0 %v359
    %483 = vmatpush.bf16.msra.mxu0 %v358
    %484 = vmatpush.bf16.msra.mxu0 %v357
    %485 = vmatmul.bf16.gmra.mxu0 %v31
    %v486 = vpop.f32.mrf.mxu0
    %v487 = vadd.f32 %v473, %v486
    %v488 = vpop.f32.mrf.mxu0
    %v489 = vadd.f32 %v475, %v488
    %490 = vdwg.mxu0
    %491 = vmatpush.bf16.msra.mxu0 %v372
    %492 = vmatpush.bf16.msra.mxu0 %v371
    %493 = vmatpush.bf16.msra.mxu0 %v370
    %494 = vmatpush.bf16.msra.mxu0 %v369
    %495 = vmatpush.bf16.msra.mxu0 %v368
    %496 = vmatpush.bf16.msra.mxu0 %v367
    %497 = vmatpush.bf16.msra.mxu0 %v366
    %498 = vmatpush.bf16.msra.mxu0 %v365
    %499 = vmatmul.bf16.gmra.mxu0 %v32
    %v500 = vpop.f32.mrf.mxu0
    %v501 = vadd.f32 %v487, %v500
    %v502 = vpop.f32.mrf.mxu0
    %v503 = vadd.f32 %v489, %v502
    %504 = vdwg.mxu0
    %vm505 = vcmask 523264
    %506 = vst.msk [vmem:[#allocation2] sm:$0xff] %vm505, %v501
    %507 = vst.msk [vmem:[#allocation2 + $0x8] sm:$0xff] %vm505, %v503
    // Predicated region
    $region14: #{tpu_custom_call.1} parent=1 // pred_check
      _
    $region15: #{tpu_custom_call.1} parent=1 // pred_check_branch
      %509 = sbr.rel (0) target = $region17
    $region16: #{tpu_custom_call.1} parent=1 // pred_region
      %511 = vsyncadd [#allocation3], 0
      %s512 = sshll.u32 [#allocation2], 4
      %s513 = int_to_ptr.vmem [resolvable:$true] %s512
      %s514 = sshll.u32 %s3, 4
      %s515 = int_to_ptr.hbm [resolvable:$true] %s514
      %520 = dma.vmem_to_hbm [thread:$0]  %s513, 256, %s515, [#allocation3], 128, 128, 8
    $region17: #{tpu_custom_call.1} parent=1 // pred_fallthru
      _
    // Predicated region
    $region18: #{tpu_custom_call.1} parent=1 // pred_check
      _
    $region19: #{tpu_custom_call.1} parent=1 // pred_check_branch
      %522 = sbr.rel (0) target = $region21
    $region20: #{tpu_custom_call.1} parent=1 // pred_region
      %524 = dma.done [#allocation3], 256
    $region21: #{tpu_custom_call.1} parent=1 // pred_fallthru
      _
    %525 = vsyncpa [#allocation3], 1

</llo_original>
